<compile_context>
chip_gen: v7x
topology: tpu7x:2x2x1
jax: 0.10.0
libtpu: 0.0.40
codegen_flags: <defaults>
</compile_context>

<pallas_src>
import jax
import jax.numpy as jnp
from jax.experimental import pallas as pl
from jax.experimental.pallas import tpu as pltpu

HIDDEN = 64
N_OUT = 2


def _round_up(n, m):
    return ((n + m - 1) // m) * m


def prepare_params(params):
    """One-time re-layout of the 6 parameter arrays for the transposed kernel.

    Returns (w1T (64, n_in), b1 (64, 1), w2T (64, 64), b2 (64, 1),
             w_diff (1, 64), b_diff (1, 1)) — all f32.
    """
    w1, b1, w2, b2, w3, b3 = params
    w1t = jnp.asarray(w1, jnp.float32).T                        # (64, n_in)
    b1c = jnp.asarray(b1, jnp.float32).reshape(HIDDEN, 1)       # (64, 1)
    w2t = jnp.asarray(w2, jnp.float32).T                        # (64, 64)
    b2c = jnp.asarray(b2, jnp.float32).reshape(HIDDEN, 1)       # (64, 1)
    w3f = jnp.asarray(w3, jnp.float32).reshape(HIDDEN, N_OUT)
    b3f = jnp.asarray(b3, jnp.float32).reshape(N_OUT)
    w_diff = (w3f[:, 1] - w3f[:, 0]).reshape(1, HIDDEN)         # (1, 64)
    b_diff = (b3f[1] - b3f[0]).reshape(1, 1)                    # (1, 1)
    return w1t, b1c, w2t, b2c, w_diff, b_diff


def get_action_kernel(x_ref, w1t_ref, b1_ref, w2t_ref, b2_ref, wd_ref, bd_ref,
                      out_ref):
    """One batch tile (feature-major): MLP head + folded fc + 2-class softmax."""
    xt = x_ref[...]                                             # (n_in, TB)

    # head: Linear -> Tanh -> Linear -> Tanh  (transposed: weights are LHS).
    h1 = jnp.tanh(
        jnp.dot(w1t_ref[...], xt, preferred_element_type=jnp.float32)
        + b1_ref[...])                                          # (64, TB)
    h2 = jnp.tanh(
        jnp.dot(w2t_ref[...], h1, preferred_element_type=jnp.float32)
        + b2_ref[...])                                          # (64, TB)

    # fc folded to the logit gap: d = z1 - z0.
    d = (jnp.dot(wd_ref[...], h2, preferred_element_type=jnp.float32)
         + bd_ref[...])                                         # (1, TB)

    # get_prob: 2-class stable softmax == stable sigmoid of the logit gap.
    e = jnp.exp(-jnp.abs(d))                                    # in (0, 1]
    p1 = jnp.where(d >= 0.0, 1.0, e) / (1.0 + e)
    p0 = 1.0 - p1
    out_ref[...] = jnp.concatenate([p0, p1], axis=0)            # (2, TB) lane-dense


def get_action(x, params_t, *, tb=None):
    """probs (B, 2) = softmax(fc(head(x))). Batch-gridded, lane-dense layout."""
    B, n_in = x.shape
    w1t, b1c, w2t, b2c, w_diff, b_diff = params_t
    assert w1t.shape == (HIDDEN, n_in)

    # Batch tile on the 128-lane axis.  Whole batch in one step when small;
    # otherwise >=2 steps (so v7x's second TensorCore gets work), capped so the
    # per-step working set (x/out tiles + two (64, tb) f32 intermediates) stays
    # well under the scoped-VMEM limit on every generation.
    b128 = _round_up(max(B, 1), 128)
    if tb is None:
        tb = b128 if b128 <= 1024 else min(4096, _round_up(pl.cdiv(B, 2), 128))
    tb = _round_up(tb, 128)
    b_pad = _round_up(max(B, 1), tb)
    grid = (b_pad // tb,)

    # Feature-major (lane-dense) input; padding fuses into this same copy.
    xt = x.astype(jnp.float32).T                                # (n_in, B)
    if b_pad != B:
        xt = jnp.pad(xt, ((0, 0), (0, b_pad - B)))

    cost = pl.CostEstimate(
        flops=2 * b_pad * (n_in * HIDDEN + HIDDEN * HIDDEN + HIDDEN),
        transcendentals=b_pad * (2 * HIDDEN + 1),
        bytes_accessed=4 * (b_pad * (n_in + N_OUT)
                            + HIDDEN * (n_in + HIDDEN + 3) + 1),
    )

    const = lambda i: (0, 0)
    out_t = pl.pallas_call(
        get_action_kernel,
        out_shape=jax.ShapeDtypeStruct((N_OUT, b_pad), jnp.float32),
        grid=grid,
        in_specs=[
            # xT: tiled over batch lanes, pipelined/double-buffered by Pallas.
            pl.BlockSpec((n_in, tb), lambda i: (0, i)),
            # parameters: full-array blocks, constant index -> VMEM-resident.
            pl.BlockSpec((HIDDEN, n_in), const),   # w1T
            pl.BlockSpec((HIDDEN, 1), const),      # b1
            pl.BlockSpec((HIDDEN, HIDDEN), const), # w2T
            pl.BlockSpec((HIDDEN, 1), const),      # b2
            pl.BlockSpec((1, HIDDEN), const),      # w_diff
            pl.BlockSpec((1, 1), const),           # b_diff
        ],
        out_specs=pl.BlockSpec((N_OUT, tb), lambda i: (0, i)),
        compiler_params=pltpu.CompilerParams(
            dimension_semantics=("parallel",)),    # 2nd TensorCore on v7x
        cost_estimate=cost,
    )(xt, w1t, b1c, w2t, b2c, w_diff, b_diff)

    # Module API: (B, 2) probabilities.
    return out_t[:, :B].T


def init_params(key, n_in, hidden=HIDDEN, n_out=N_OUT):
    """Deterministic init (uniform +-1/sqrt(fan_in), like torch Linear)."""
    ks = jax.random.split(key, 6)

    def lin(kw, kb, fan_in, fan_out):
        bound = 1.0 / jnp.sqrt(jnp.float32(fan_in))
        w = jax.random.uniform(kw, (fan_in, fan_out), jnp.float32, -bound, bound)
        b = jax.random.uniform(kb, (1, fan_out), jnp.float32, -bound, bound)
        return w, b

    w1, b1 = lin(ks[0], ks[1], n_in, hidden)
    w2, b2 = lin(ks[2], ks[3], hidden, hidden)
    w3, b3 = lin(ks[4], ks[5], hidden, n_out)
    return w1, b1, w2, b2, w3, b3


def reference_forward(x, params):
    """Plain-JAX reference mirroring the PyTorch module."""
    w1, b1, w2, b2, w3, b3 = params
    h = jnp.tanh(x @ w1 + b1)
    h = jnp.tanh(h @ w2 + b2)
    z = h @ w3 + b3
    vmax = jnp.max(z, axis=-1, keepdims=True)
    out = jnp.log(jnp.sum(jnp.exp(z - vmax), axis=-1, keepdims=True)) + vmax
    logits = z - out
    return jnp.exp(logits).reshape(-1, 2)


# TODO(synk): the train_type='cnn' branch (Conv2d head) of GetAction is not
# implemented; this kernel covers the default 'mlp' path used for export.

if __name__ == "__main__":
    key = jax.random.PRNGKey(0)
    k_x, k_p, k_x2 = jax.random.split(key, 3)

    batch = 2
    n_input_channels = 4   # observation_space.shape[0]

    x = jax.random.normal(k_x, (batch, n_input_channels), jnp.float32)
    params = init_params(k_p, n_input_channels)
    params_t = prepare_params(params)         # one-time weight re-layout

    probs = jax.block_until_ready(get_action(x, params_t))
    ref = reference_forward(x, params)
    assert probs.shape == (batch, 2)
    assert jnp.allclose(probs, ref, atol=1e-5), "mismatch vs reference (B=2)"
    assert jnp.allclose(jnp.sum(probs, axis=-1), 1.0, atol=1e-5)

    # Exercise the multi-step batch grid + B % TB != 0 (padded last tile) path.
    x2 = jax.random.normal(k_x2, (300, n_input_channels), jnp.float32)
    probs2 = jax.block_until_ready(get_action(x2, params_t, tb=128))
    ref2 = reference_forward(x2, params)
    assert probs2.shape == (300, 2)
    assert jnp.allclose(probs2, ref2, atol=1e-5), "mismatch vs reference (B=300)"
    assert jnp.allclose(jnp.sum(probs2, axis=-1), 1.0, atol=1e-5)

    print("KERNEL_OK")
</pallas_src>

<mosaic_0001>
module attributes {stable_mosaic.version = 11 : i64} {
  func.func @get_action_kernel(%arg0: i32, %arg1: memref<4x128xf32, #tpu.memory_space<vmem>>, %arg2: memref<64x4xf32, #tpu.memory_space<vmem>>, %arg3: memref<64x1xf32, #tpu.memory_space<vmem>>, %arg4: memref<64x64xf32, #tpu.memory_space<vmem>>, %arg5: memref<64x1xf32, #tpu.memory_space<vmem>>, %arg6: memref<1x64xf32, #tpu.memory_space<vmem>>, %arg7: memref<1x1xf32, #tpu.memory_space<vmem>>, %arg8: memref<2x128xf32, #tpu.memory_space<vmem>>) attributes {dimension_semantics = [#tpu.dimension_semantics<parallel>], iteration_bounds = array<i64: 1>, scalar_prefetch = 0 : i64, scratch_operands = 0 : i64, tpu.core_type = #tpu.core_type<tc>, window_params = [{transform_indices = @transform_0, window_bounds = array<i64: 4, 128>}, {pipeline_mode = #tpu.pipeline_mode<synchronous>, transform_indices = @transform_1, window_bounds = array<i64: 64, 4>}, {pipeline_mode = #tpu.pipeline_mode<synchronous>, transform_indices = @transform_2, window_bounds = array<i64: 64, 1>}, {pipeline_mode = #tpu.pipeline_mode<synchronous>, transform_indices = @transform_3, window_bounds = array<i64: 64, 64>}, {pipeline_mode = #tpu.pipeline_mode<synchronous>, transform_indices = @transform_4, window_bounds = array<i64: 64, 1>}, {pipeline_mode = #tpu.pipeline_mode<synchronous>, transform_indices = @transform_5, window_bounds = array<i64: 1, 64>}, {pipeline_mode = #tpu.pipeline_mode<synchronous>, transform_indices = @transform_6, window_bounds = array<i64: 1, 1>}, {transform_indices = @transform_7, window_bounds = array<i64: 2, 128>}]} {
    %c0 = arith.constant 0 : index
    %c0_0 = arith.constant 0 : index
    %0 = vector.load %arg1[%c0, %c0_0] : memref<4x128xf32, #tpu.memory_space<vmem>>, vector<4x128xf32>
    %c0_1 = arith.constant 0 : index
    %c0_2 = arith.constant 0 : index
    %1 = vector.load %arg2[%c0_1, %c0_2] : memref<64x4xf32, #tpu.memory_space<vmem>>, vector<64x4xf32>
    %cst = arith.constant dense<0.000000e+00> : vector<64x128xf32>
    %2 = tpu.matmul %1, %0, %cst {dimension_numbers = #tpu.dot_dimension_numbers<[1], [0], [0], [1], [0, 0, 1, 1], [], []>} : vector<64x4xf32>, vector<4x128xf32>, vector<64x128xf32> -> vector<64x128xf32>
    %c0_3 = arith.constant 0 : index
    %c0_4 = arith.constant 0 : index
    %3 = vector.load %arg3[%c0_3, %c0_4] : memref<64x1xf32, #tpu.memory_space<vmem>>, vector<64x1xf32>
    %4 = vector.broadcast %3 : vector<64x1xf32> to vector<64x128xf32>
    %5 = arith.addf %2, %4 : vector<64x128xf32>
    %6 = math.tanh %5 : vector<64x128xf32>
    %c0_5 = arith.constant 0 : index
    %c0_6 = arith.constant 0 : index
    %7 = vector.load %arg4[%c0_5, %c0_6] : memref<64x64xf32, #tpu.memory_space<vmem>>, vector<64x64xf32>
    %cst_7 = arith.constant dense<0.000000e+00> : vector<64x128xf32>
    %8 = tpu.matmul %7, %6, %cst_7 {dimension_numbers = #tpu.dot_dimension_numbers<[1], [0], [0], [1], [0, 0, 1, 1], [], []>} : vector<64x64xf32>, vector<64x128xf32>, vector<64x128xf32> -> vector<64x128xf32>
    %c0_8 = arith.constant 0 : index
    %c0_9 = arith.constant 0 : index
    %9 = vector.load %arg5[%c0_8, %c0_9] : memref<64x1xf32, #tpu.memory_space<vmem>>, vector<64x1xf32>
    %10 = vector.broadcast %9 : vector<64x1xf32> to vector<64x128xf32>
    %11 = arith.addf %8, %10 : vector<64x128xf32>
    %12 = math.tanh %11 : vector<64x128xf32>
    %c0_10 = arith.constant 0 : index
    %c0_11 = arith.constant 0 : index
    %13 = vector.load %arg6[%c0_10, %c0_11] : memref<1x64xf32, #tpu.memory_space<vmem>>, vector<1x64xf32>
    %cst_12 = arith.constant dense<0.000000e+00> : vector<1x128xf32>
    %14 = tpu.matmul %13, %12, %cst_12 {dimension_numbers = #tpu.dot_dimension_numbers<[1], [0], [0], [1], [0, 0, 1, 1], [], []>} : vector<1x64xf32>, vector<64x128xf32>, vector<1x128xf32> -> vector<1x128xf32>
    %c0_13 = arith.constant 0 : index
    %c0_14 = arith.constant 0 : index
    %15 = vector.load %arg7[%c0_13, %c0_14] : memref<1x1xf32, #tpu.memory_space<vmem>>, vector<1x1xf32>
    %16 = vector.broadcast %15 : vector<1x1xf32> to vector<1x128xf32>
    %17 = arith.addf %14, %16 : vector<1x128xf32>
    %18 = math.absf %17 : vector<1x128xf32>
    %cst_15 = arith.constant 0.000000e+00 : f32
    %19 = vector.broadcast %cst_15 : f32 to vector<1x128xf32>
    %20 = arith.subf %19, %18 : vector<1x128xf32>
    %21 = math.exp %20 : vector<1x128xf32>
    %cst_16 = arith.constant 0.000000e+00 : f32
    %22 = vector.broadcast %cst_16 : f32 to vector<1x128xf32>
    %23 = arith.cmpf oge, %17, %22 : vector<1x128xf32>
    %cst_17 = arith.constant 1.000000e+00 : f32
    %24 = vector.broadcast %cst_17 : f32 to vector<1x128xf32>
    %25 = arith.select %23, %24, %21 : vector<1x128xi1>, vector<1x128xf32>
    %cst_18 = arith.constant 1.000000e+00 : f32
    %26 = vector.broadcast %cst_18 : f32 to vector<1x128xf32>
    %27 = arith.addf %26, %21 : vector<1x128xf32>
    %28 = arith.divf %25, %27 : vector<1x128xf32>
    %cst_19 = arith.constant 1.000000e+00 : f32
    %29 = vector.broadcast %cst_19 : f32 to vector<1x128xf32>
    %30 = arith.subf %29, %28 : vector<1x128xf32>
    %31 = tpu.concatenate %30, %28 in 0 : vector<1x128xf32>, vector<1x128xf32> -> vector<2x128xf32>
    %c0_20 = arith.constant 0 : index
    %c0_21 = arith.constant 0 : index
    %32 = vector.load %arg8[%c0_20, %c0_21] : memref<2x128xf32, #tpu.memory_space<vmem>>, vector<2x128xf32>
    tpu.vector_store %arg8[%c0_20, %c0_21], %31 {strides = array<i32>} : memref<2x128xf32, #tpu.memory_space<vmem>>, vector<2x128xf32>,
    return
  }
  func.func @transform_0(%arg0: i32) -> (i32, i32) {
    %c0_i32 = arith.constant 0 : i32
    %c0_i32_0 = arith.constant 0 : i32
    return %c0_i32, %arg0 : i32, i32
  }
  func.func @transform_1(%arg0: i32) -> (i32, i32) {
    %c0_i32 = arith.constant 0 : i32
    %c0_i32_0 = arith.constant 0 : i32
    %c0_i32_1 = arith.constant 0 : i32
    return %c0_i32, %c0_i32_0 : i32, i32
  }
  func.func @transform_2(%arg0: i32) -> (i32, i32) {
    %c0_i32 = arith.constant 0 : i32
    %c0_i32_0 = arith.constant 0 : i32
    %c0_i32_1 = arith.constant 0 : i32
    return %c0_i32, %c0_i32_0 : i32, i32
  }
  func.func @transform_3(%arg0: i32) -> (i32, i32) {
    %c0_i32 = arith.constant 0 : i32
    %c0_i32_0 = arith.constant 0 : i32
    %c0_i32_1 = arith.constant 0 : i32
    return %c0_i32, %c0_i32_0 : i32, i32
  }
  func.func @transform_4(%arg0: i32) -> (i32, i32) {
    %c0_i32 = arith.constant 0 : i32
    %c0_i32_0 = arith.constant 0 : i32
    %c0_i32_1 = arith.constant 0 : i32
    return %c0_i32, %c0_i32_0 : i32, i32
  }
  func.func @transform_5(%arg0: i32) -> (i32, i32) {
    %c0_i32 = arith.constant 0 : i32
    %c0_i32_0 = arith.constant 0 : i32
    %c0_i32_1 = arith.constant 0 : i32
    return %c0_i32, %c0_i32_0 : i32, i32
  }
  func.func @transform_6(%arg0: i32) -> (i32, i32) {
    %c0_i32 = arith.constant 0 : i32
    %c0_i32_0 = arith.constant 0 : i32
    %c0_i32_1 = arith.constant 0 : i32
    return %c0_i32, %c0_i32_0 : i32, i32
  }
  func.func @transform_7(%arg0: i32) -> (i32, i32) {
    %c0_i32 = arith.constant 0 : i32
    %c0_i32_0 = arith.constant 0 : i32
    return %c0_i32, %arg0 : i32, i32
  }
}

</mosaic_0001>

<llo_original>
// kernel: tpu_custom_call.1
$region0: #{tpu_custom_call.1}
  #allocation0 [shape = 'u32[]', space=smem, size = 0x4, offset = 0x4, fixed_abs, tag = 'smem constant byte address 0x4 - core index']
  #allocation1 [shape = 'u32[144,128]{1,0:T(1,128)}', space=vmem, size = 0x12000, scoped, tag = 'internal scratch']
  #allocation2 [shape = 'f32[1,1]{1,0:T(1,128)S(1)}', space=vmem, size = 0x200, scoped, tag = 'scoped memory for tpu_custom_call.1']
  %s0 = inlined_call_operand.vmem [shape: f32[4,128], index: 0, kind: input, shape index: {}]
  %s1 = inlined_call_operand.vmem [shape: f32[64,4], index: 1, kind: input, shape index: {}]
  %s2 = inlined_call_operand.vmem [shape: f32[64,1], index: 2, kind: input, shape index: {}]
  %s3 = inlined_call_operand.vmem [shape: f32[64,64], index: 3, kind: input, shape index: {}]
  %s4 = inlined_call_operand.vmem [shape: f32[64,1], index: 4, kind: input, shape index: {}]
  %s5 = inlined_call_operand.vmem [shape: f32[1,64], index: 5, kind: input, shape index: {}]
  %s6 = inlined_call_operand.<no memory space> [shape: f32[1,1], index: 6, kind: input, shape index: {}]
  %s7 = inlined_call_operand.hbm [shape: f32[2,128], index: 7, kind: output, shape index: {}]
  %s8 = sld [smem:[#allocation0]]
  $region38: #{tpu_custom_call.1} parent=0
    _
  %s10 = ssub.s32 1, %s8
  %s11 = scalar_select 0, %s10, %s8
  %v12 = vstv %s6
  %13 = vst [vmem:[#allocation2] sm:$0x1] %v12
  $region1: #{tpu_custom_call.1} parent=0
    #allocation3 [shape = 'u8[1024]{0}', space=vmem, size = 0x400, scoped, tag = 'output window, operand 0, single buffered']
    #allocation4 [shape = 's32[1]{0}', space=sflag, size = 0x4, scoped, tag = 'scoped memory for tpu_custom_call.1']
    %14 = vsyncpa [#allocation4], 0
    // Predicated region
    $region2: #{tpu_custom_call.1} parent=1 // pred_check
      _
    $region3: #{tpu_custom_call.1} parent=1 // pred_check_branch
      %16 = sbr.rel (0) target = $region5
    $region4: #{tpu_custom_call.1} parent=1 // pred_region
      _
    $region5: #{tpu_custom_call.1} parent=1 // pred_fallthru
      _
    // Predicated region
    $region6: #{tpu_custom_call.1} parent=1 // pred_check
      _
    $region7: #{tpu_custom_call.1} parent=1 // pred_check_branch
      %18 = sbr.rel (0) target = $region9
    $region8: #{tpu_custom_call.1} parent=1 // pred_region
      _
    $region9: #{tpu_custom_call.1} parent=1 // pred_fallthru
      _
    // Predicated region
    $region10: #{tpu_custom_call.1} parent=1 // pred_check
      _
    $region11: #{tpu_custom_call.1} parent=1 // pred_check_branch
      %20 = sbr.rel (0) target = $region13
    $region12: #{tpu_custom_call.1} parent=1 // pred_region
      _
    $region13: #{tpu_custom_call.1} parent=1 // pred_fallthru
      _
    // Predicated region
    $region14: #{tpu_custom_call.1} parent=1 // pred_check
      _
    $region15: #{tpu_custom_call.1} parent=1 // pred_check_branch
      %22 = sbr.rel (0) target = $region17
    $region16: #{tpu_custom_call.1} parent=1 // pred_region
      _
    $region17: #{tpu_custom_call.1} parent=1 // pred_fallthru
      _
    // Predicated region
    $region18: #{tpu_custom_call.1} parent=1 // pred_check
      _
    $region19: #{tpu_custom_call.1} parent=1 // pred_check_branch
      %24 = sbr.rel (0) target = $region21
    $region20: #{tpu_custom_call.1} parent=1 // pred_region
      _
    $region21: #{tpu_custom_call.1} parent=1 // pred_fallthru
      _
    // Predicated region
    $region22: #{tpu_custom_call.1} parent=1 // pred_check
      _
    $region23: #{tpu_custom_call.1} parent=1 // pred_check_branch
      %26 = sbr.rel (0) target = $region25
    $region24: #{tpu_custom_call.1} parent=1 // pred_region
      _
    $region25: #{tpu_custom_call.1} parent=1 // pred_fallthru
      _
    // Predicated region
    $region26: #{tpu_custom_call.1} parent=1 // pred_check
      _
    $region27: #{tpu_custom_call.1} parent=1 // pred_check_branch
      %28 = sbr.rel (0) target = $region29
    $region28: #{tpu_custom_call.1} parent=1 // pred_region
      _
    $region29: #{tpu_custom_call.1} parent=1 // pred_fallthru
      _
    %v29 = vld [vmem:[%s0] sm:$0xf]
    %v30 = vld [vmem:[%s1] sm:$0xff]
    %v31 = vld [vmem:[%s1 + $0x8] sm:$0xff]
    %v32 = vld [vmem:[%s1 + $0x10] sm:$0xff]
    %v33 = vld [vmem:[%s1 + $0x18] sm:$0xff]
    %v34 = vld [vmem:[%s1 + $0x20] sm:$0xff]
    %v35 = vld [vmem:[%s1 + $0x28] sm:$0xff]
    %v36 = vld [vmem:[%s1 + $0x30] sm:$0xff]
    %v37 = vld [vmem:[%s1 + $0x38] sm:$0xff]
    %v38 = vld [vmem:[%s2] sm:$0xff]
    %v39 = vld [vmem:[%s2 + $0x8] sm:$0xff]
    %v40 = vld [vmem:[%s2 + $0x10] sm:$0xff]
    %v41 = vld [vmem:[%s2 + $0x18] sm:$0xff]
    %v42 = vld [vmem:[%s2 + $0x20] sm:$0xff]
    %v43 = vld [vmem:[%s2 + $0x28] sm:$0xff]
    %v44 = vld [vmem:[%s2 + $0x30] sm:$0xff]
    %v45 = vld [vmem:[%s2 + $0x38] sm:$0xff]
    %47 = vset.pattern.permute.xlu0 0
    %48 = vperm.xlu0 %47, %v38
    %v49 = vpop.permute.xlu0 %48
    %52 = vset.pattern.permute.xlu0 0
    %53 = vperm.xlu0 %52, %v39
    %v54 = vpop.permute.xlu0 %53
    %57 = vset.pattern.permute.xlu0 0
    %58 = vperm.xlu0 %57, %v40
    %v59 = vpop.permute.xlu0 %58
    %62 = vset.pattern.permute.xlu0 0
    %63 = vperm.xlu0 %62, %v41
    %v64 = vpop.permute.xlu0 %63
    %67 = vset.pattern.permute.xlu0 0
    %68 = vperm.xlu0 %67, %v42
    %v69 = vpop.permute.xlu0 %68
    %72 = vset.pattern.permute.xlu0 0
    %73 = vperm.xlu0 %72, %v43
    %v74 = vpop.permute.xlu0 %73
    %77 = vset.pattern.permute.xlu0 0
    %78 = vperm.xlu0 %77, %v44
    %v79 = vpop.permute.xlu0 %78
    %82 = vset.pattern.permute.xlu0 0
    %83 = vperm.xlu0 %82, %v45
    %v84 = vpop.permute.xlu0 %83
    %vm86 = vcmask 31744
    %v88 = vsel %vm86, %v30, 0
    %v91 = vsel %vm86, %v31, 0
    %v94 = vsel %vm86, %v32, 0
    %v97 = vsel %vm86, %v33, 0
    %v100 = vsel %vm86, %v34, 0
    %v103 = vsel %vm86, %v35, 0
    %v106 = vsel %vm86, %v36, 0
    %v109 = vsel %vm86, %v37, 0
    %vm111 = vcmask 1043456
    %v113 = vsel %vm111, %v29, 0
    %115 = vmatprep.subr.mxu0 0.0
    %116 = vmatpush1.msra.mxu0 %v113
    %117 = vmatprep.subr.mxu0 0.0
    %118 = vmatpush1.msra.mxu0 0.0
    %119 = vmatprep.subr.mxu0 0.0
    %120 = vmatpush1.msra.mxu0 0.0
    %121 = vmatprep.subr.mxu0 0.0
    %122 = vmatpush1.msra.mxu0 0.0
    %123 = vmatprep.subr.mxu0 0.0
    %124 = vmatpush1.msra.mxu0 0.0
    %125 = vmatprep.subr.mxu0 0.0
    %126 = vmatpush1.msra.mxu0 0.0
    %127 = vmatprep.subr.mxu0 0.0
    %128 = vmatpush1.msra.mxu0 0.0
    %129 = vmatprep.subr.mxu0 0.0
    %130 = vmatpush1.msra.mxu0 0.0
    %131 = vmatprep.subr.mxu0 0.0
    %132 = vmatpush1.msra.mxu0 0.0
    %133 = vmatprep.subr.mxu0 0.0
    %134 = vmatpush1.msra.mxu0 0.0
    %135 = vmatprep.subr.mxu0 0.0
    %136 = vmatpush1.msra.mxu0 0.0
    %137 = vmatprep.subr.mxu0 0.0
    %138 = vmatpush1.msra.mxu0 0.0
    %139 = vmatprep.subr.mxu0 0.0
    %140 = vmatpush1.msra.mxu0 0.0
    %141 = vmatprep.subr.mxu0 0.0
    %142 = vmatpush1.msra.mxu0 0.0
    %143 = vmatprep.subr.mxu0 0.0
    %144 = vmatpush1.msra.mxu0 0.0
    %145 = vmatprep.subr.mxu0 0.0
    %146 = vmatpush1.msra.mxu0 0.0
    %147 = vmatprep.subr.mxu0 0.0
    %148 = vmatpush1.msra.mxu0 0.0
    %149 = vmatprep.subr.mxu0 0.0
    %150 = vmatpush1.msra.mxu0 0.0
    %151 = vmatprep.subr.mxu0 0.0
    %152 = vmatpush1.msra.mxu0 0.0
    %153 = vmatprep.subr.mxu0 0.0
    %154 = vmatpush1.msra.mxu0 0.0
    %155 = vmatprep.subr.mxu0 0.0
    %156 = vmatpush1.msra.mxu0 0.0
    %157 = vmatprep.subr.mxu0 0.0
    %158 = vmatpush1.msra.mxu0 0.0
    %159 = vmatprep.subr.mxu0 0.0
    %160 = vmatpush1.msra.mxu0 0.0
    %161 = vmatprep.subr.mxu0 0.0
    %162 = vmatpush1.msra.mxu0 0.0
    %163 = vmatprep.subr.mxu0 0.0
    %164 = vmatpush1.msra.mxu0 0.0
    %165 = vmatprep.subr.mxu0 0.0
    %166 = vmatpush1.msra.mxu0 0.0
    %167 = vmatprep.subr.mxu0 0.0
    %168 = vmatpush1.msra.mxu0 0.0
    %169 = vmatprep.subr.mxu0 0.0
    %170 = vmatpush1.msra.mxu0 0.0
    %171 = vmatprep.subr.mxu0 0.0
    %172 = vmatpush1.msra.mxu0 0.0
    %173 = vmatprep.subr.mxu0 0.0
    %174 = vmatpush1.msra.mxu0 0.0
    %175 = vmatprep.subr.mxu0 0.0
    %176 = vmatpush1.msra.mxu0 0.0
    %177 = vmatprep.subr.mxu0 0.0
    %178 = vmatpush1.msra.mxu0 0.0
    %179 = vmatprep.mubr.f32.mxu0 0.0
    %180 = vmatmul.mubr.f32.gmra.mrb[0].mxu0 %v88
    %v181 = vpop.f32.mrb[0].mxu0
    %v182 = vadd.f32 %v49, %v181
    %v183 = vpop.f32.mrb[0].mxu0
    %184 = vmatprep.mubr.f32.mxu0 0.0
    %185 = vmatmul.mubr.f32.gmra.mrb[0].mxu0 %v91
    %v186 = vpop.f32.mrb[0].mxu0
    %v187 = vadd.f32 %v54, %v186
    %v188 = vpop.f32.mrb[0].mxu0
    %189 = vmatprep.mubr.f32.mxu0 0.0
    %190 = vmatmul.mubr.f32.gmra.mrb[0].mxu0 %v94
    %v191 = vpop.f32.mrb[0].mxu0
    %v192 = vadd.f32 %v59, %v191
    %v193 = vpop.f32.mrb[0].mxu0
    %194 = vmatprep.mubr.f32.mxu0 0.0
    %195 = vmatmul.mubr.f32.gmra.mrb[0].mxu0 %v97
    %v196 = vpop.f32.mrb[0].mxu0
    %v197 = vadd.f32 %v64, %v196
    %v198 = vpop.f32.mrb[0].mxu0
    %199 = vmatprep.mubr.f32.mxu0 0.0
    %200 = vmatmul.mubr.f32.gmra.mrb[0].mxu0 %v100
    %v201 = vpop.f32.mrb[0].mxu0
    %v202 = vadd.f32 %v69, %v201
    %v203 = vpop.f32.mrb[0].mxu0
    %204 = vmatprep.mubr.f32.mxu0 0.0
    %205 = vmatmul.mubr.f32.gmra.mrb[0].mxu0 %v103
    %v206 = vpop.f32.mrb[0].mxu0
    %v207 = vadd.f32 %v74, %v206
    %v208 = vpop.f32.mrb[0].mxu0
    %209 = vmatprep.mubr.f32.mxu0 0.0
    %210 = vmatmul.mubr.f32.gmra.mrb[0].mxu0 %v106
    %v211 = vpop.f32.mrb[0].mxu0
    %v212 = vadd.f32 %v79, %v211
    %v213 = vpop.f32.mrb[0].mxu0
    %214 = vmatprep.mubr.f32.mxu0 0.0
    %215 = vmatmul.mubr.f32.gmra.mrb[0].mxu0 %v109
    %v216 = vpop.f32.mrb[0].mxu0
    %v217 = vadd.f32 %v84, %v216
    %v218 = vpop.f32.mrb[0].mxu0
    %219 = vdwg.mxu0
    %v220 = vtanh.pop %v182
    %v221 = vtanh.pop %v187
    %v222 = vtanh.pop %v192
    %v223 = vtanh.pop %v197
    %v224 = vtanh.pop %v202
    %v225 = vtanh.pop %v207
    %v226 = vtanh.pop %v212
    %v227 = vtanh.pop %v217
    %v228 = vld [vmem:[%s3] sm:$0xff]
    %v229 = vld [vmem:[%s3 + $0x8] sm:$0xff]
    %v230 = vld [vmem:[%s3 + $0x10] sm:$0xff]
    %v231 = vld [vmem:[%s3 + $0x18] sm:$0xff]
    %v232 = vld [vmem:[%s3 + $0x20] sm:$0xff]
    %v233 = vld [vmem:[%s3 + $0x28] sm:$0xff]
    %v234 = vld [vmem:[%s3 + $0x30] sm:$0xff]
    %v235 = vld [vmem:[%s3 + $0x38] sm:$0xff]
    %v236 = vld [vmem:[%s4] sm:$0xff]
    %v237 = vld [vmem:[%s4 + $0x8] sm:$0xff]
    %v238 = vld [vmem:[%s4 + $0x10] sm:$0xff]
    %v239 = vld [vmem:[%s4 + $0x18] sm:$0xff]
    %v240 = vld [vmem:[%s4 + $0x20] sm:$0xff]
    %v241 = vld [vmem:[%s4 + $0x28] sm:$0xff]
    %v242 = vld [vmem:[%s4 + $0x30] sm:$0xff]
    %v243 = vld [vmem:[%s4 + $0x38] sm:$0xff]
    %245 = vset.pattern.permute.xlu0 0
    %246 = vperm.xlu0 %245, %v236
    %v247 = vpop.permute.xlu0 %246
    %250 = vset.pattern.permute.xlu0 0
    %251 = vperm.xlu0 %250, %v237
    %v252 = vpop.permute.xlu0 %251
    %255 = vset.pattern.permute.xlu0 0
    %256 = vperm.xlu0 %255, %v238
    %v257 = vpop.permute.xlu0 %256
    %260 = vset.pattern.permute.xlu0 0
    %261 = vperm.xlu0 %260, %v239
    %v262 = vpop.permute.xlu0 %261
    %265 = vset.pattern.permute.xlu0 0
    %266 = vperm.xlu0 %265, %v240
    %v267 = vpop.permute.xlu0 %266
    %270 = vset.pattern.permute.xlu0 0
    %271 = vperm.xlu0 %270, %v241
    %v272 = vpop.permute.xlu0 %271
    %275 = vset.pattern.permute.xlu0 0
    %276 = vperm.xlu0 %275, %v242
    %v277 = vpop.permute.xlu0 %276
    %280 = vset.pattern.permute.xlu0 0
    %281 = vperm.xlu0 %280, %v243
    %v282 = vpop.permute.xlu0 %281
    %vm284 = vcmask 523264
    %v286 = vsel %vm284, %v228, 0
    %v289 = vsel %vm284, %v229, 0
    %v292 = vsel %vm284, %v230, 0
    %v295 = vsel %vm284, %v231, 0
    %v298 = vsel %vm284, %v232, 0
    %v301 = vsel %vm284, %v233, 0
    %v304 = vsel %vm284, %v234, 0
    %v307 = vsel %vm284, %v235, 0
    %309 = vmatprep.subr.mxu0 0.0
    %310 = vmatpush1.msra.mxu0 %v220
    %311 = vmatprep.subr.mxu0 0.0
    %312 = vmatpush1.msra.mxu0 %v221
    %313 = vmatprep.subr.mxu0 0.0
    %314 = vmatpush1.msra.mxu0 %v222
    %315 = vmatprep.subr.mxu0 0.0
    %316 = vmatpush1.msra.mxu0 %v223
    %317 = vmatprep.subr.mxu0 0.0
    %318 = vmatpush1.msra.mxu0 %v224
    %319 = vmatprep.subr.mxu0 0.0
    %320 = vmatpush1.msra.mxu0 %v225
    %321 = vmatprep.subr.mxu0 0.0
    %322 = vmatpush1.msra.mxu0 %v226
    %323 = vmatprep.subr.mxu0 0.0
    %324 = vmatpush1.msra.mxu0 %v227
    %325 = vmatprep.subr.mxu0 0.0
    %326 = vmatpush1.msra.mxu0 0.0
    %327 = vmatprep.subr.mxu0 0.0
    %328 = vmatpush1.msra.mxu0 0.0
    %329 = vmatprep.subr.mxu0 0.0
    %330 = vmatpush1.msra.mxu0 0.0
    %331 = vmatprep.subr.mxu0 0.0
    %332 = vmatpush1.msra.mxu0 0.0
    %333 = vmatprep.subr.mxu0 0.0
    %334 = vmatpush1.msra.mxu0 0.0
    %335 = vmatprep.subr.mxu0 0.0
    %336 = vmatpush1.msra.mxu0 0.0
    %337 = vmatprep.subr.mxu0 0.0
    %338 = vmatpush1.msra.mxu0 0.0
    %339 = vmatprep.subr.mxu0 0.0
    %340 = vmatpush1.msra.mxu0 0.0
    %341 = vmatprep.subr.mxu0 0.0
    %342 = vmatpush1.msra.mxu0 0.0
    %343 = vmatprep.subr.mxu0 0.0
    %344 = vmatpush1.msra.mxu0 0.0
    %345 = vmatprep.subr.mxu0 0.0
    %346 = vmatpush1.msra.mxu0 0.0
    %347 = vmatprep.subr.mxu0 0.0
    %348 = vmatpush1.msra.mxu0 0.0
    %349 = vmatprep.subr.mxu0 0.0
    %350 = vmatpush1.msra.mxu0 0.0
    %351 = vmatprep.subr.mxu0 0.0
    %352 = vmatpush1.msra.mxu0 0.0
    %353 = vmatprep.subr.mxu0 0.0
    %354 = vmatpush1.msra.mxu0 0.0
    %355 = vmatprep.subr.mxu0 0.0
    %356 = vmatpush1.msra.mxu0 0.0
    %357 = vmatprep.subr.mxu0 0.0
    %358 = vmatpush1.msra.mxu0 0.0
    %359 = vmatprep.subr.mxu0 0.0
    %360 = vmatpush1.msra.mxu0 0.0
    %361 = vmatprep.subr.mxu0 0.0
    %362 = vmatpush1.msra.mxu0 0.0
    %363 = vmatprep.subr.mxu0 0.0
    %364 = vmatpush1.msra.mxu0 0.0
    %365 = vmatprep.subr.mxu0 0.0
    %366 = vmatpush1.msra.mxu0 0.0
    %367 = vmatprep.subr.mxu0 0.0
    %368 = vmatpush1.msra.mxu0 0.0
    %369 = vmatprep.subr.mxu0 0.0
    %370 = vmatpush1.msra.mxu0 0.0
    %371 = vmatprep.subr.mxu0 0.0
    %372 = vmatpush1.msra.mxu0 0.0
    %373 = vmatprep.mubr.f32.mxu0 0.0
    %374 = vmatmul.mubr.f32.gmra.mrb[0].mxu0 %v286
    %v375 = vpop.f32.mrb[0].mxu0
    %v376 = vadd.f32 %v247, %v375
    %v377 = vpop.f32.mrb[0].mxu0
    %378 = vmatprep.mubr.f32.mxu0 0.0
    %379 = vmatmul.mubr.f32.gmra.mrb[0].mxu0 %v289
    %v380 = vpop.f32.mrb[0].mxu0
    %v381 = vadd.f32 %v252, %v380
    %v382 = vpop.f32.mrb[0].mxu0
    %383 = vmatprep.mubr.f32.mxu0 0.0
    %384 = vmatmul.mubr.f32.gmra.mrb[0].mxu0 %v292
    %v385 = vpop.f32.mrb[0].mxu0
    %v386 = vadd.f32 %v257, %v385
    %v387 = vpop.f32.mrb[0].mxu0
    %388 = vmatprep.mubr.f32.mxu0 0.0
    %389 = vmatmul.mubr.f32.gmra.mrb[0].mxu0 %v295
    %v390 = vpop.f32.mrb[0].mxu0
    %v391 = vadd.f32 %v262, %v390
    %v392 = vpop.f32.mrb[0].mxu0
    %393 = vmatprep.mubr.f32.mxu0 0.0
    %394 = vmatmul.mubr.f32.gmra.mrb[0].mxu0 %v298
    %v395 = vpop.f32.mrb[0].mxu0
    %v396 = vadd.f32 %v267, %v395
    %v397 = vpop.f32.mrb[0].mxu0
    %398 = vmatprep.mubr.f32.mxu0 0.0
    %399 = vmatmul.mubr.f32.gmra.mrb[0].mxu0 %v301
    %v400 = vpop.f32.mrb[0].mxu0
    %v401 = vadd.f32 %v272, %v400
    %v402 = vpop.f32.mrb[0].mxu0
    %403 = vmatprep.mubr.f32.mxu0 0.0
    %404 = vmatmul.mubr.f32.gmra.mrb[0].mxu0 %v304
    %v405 = vpop.f32.mrb[0].mxu0
    %v406 = vadd.f32 %v277, %v405
    %v407 = vpop.f32.mrb[0].mxu0
    %408 = vmatprep.mubr.f32.mxu0 0.0
    %409 = vmatmul.mubr.f32.gmra.mrb[0].mxu0 %v307
    %v410 = vpop.f32.mrb[0].mxu0
    %v411 = vadd.f32 %v282, %v410
    %v412 = vpop.f32.mrb[0].mxu0
    %413 = vdwg.mxu0
    %v414 = vtanh.pop %v376
    %v415 = vtanh.pop %v381
    %v416 = vtanh.pop %v386
    %v417 = vtanh.pop %v391
    %v418 = vtanh.pop %v396
    %v419 = vtanh.pop %v401
    %v420 = vtanh.pop %v406
    %v421 = vtanh.pop %v411
    %v422 = vld [vmem:[%s5] sm:$0x1]
    %v423 = vld [vmem:[#allocation2] sm:$0x1]
    %425 = vset.pattern.permute.xlu0 0
    %426 = vperm.xlu0 %425, %v423
    %v427 = vpop.permute.xlu0 %426
    %v429 = vlaneseq
    %v430 = vshrl.u32 %v429, 7
    %v431 = vsub.s32 0, %v430
    %v432 = vrot.slane %v427, %v431
    %v434 = vsel %vm284, %v422, 0
    %436 = vmatprep.subr.mxu0 0.0
    %437 = vmatpush1.msra.mxu0 %v414
    %438 = vmatprep.subr.mxu0 0.0
    %439 = vmatpush1.msra.mxu0 %v415
    %440 = vmatprep.subr.mxu0 0.0
    %441 = vmatpush1.msra.mxu0 %v416
    %442 = vmatprep.subr.mxu0 0.0
    %443 = vmatpush1.msra.mxu0 %v417
    %444 = vmatprep.subr.mxu0 0.0
    %445 = vmatpush1.msra.mxu0 %v418
    %446 = vmatprep.subr.mxu0 0.0
    %447 = vmatpush1.msra.mxu0 %v419
    %448 = vmatprep.subr.mxu0 0.0
    %449 = vmatpush1.msra.mxu0 %v420
    %450 = vmatprep.subr.mxu0 0.0
    %451 = vmatpush1.msra.mxu0 %v421
    %452 = vmatprep.subr.mxu0 0.0
    %453 = vmatpush1.msra.mxu0 0.0
    %454 = vmatprep.subr.mxu0 0.0
    %455 = vmatpush1.msra.mxu0 0.0
    %456 = vmatprep.subr.mxu0 0.0
    %457 = vmatpush1.msra.mxu0 0.0
    %458 = vmatprep.subr.mxu0 0.0
    %459 = vmatpush1.msra.mxu0 0.0
    %460 = vmatprep.subr.mxu0 0.0
    %461 = vmatpush1.msra.mxu0 0.0
    %462 = vmatprep.subr.mxu0 0.0
    %463 = vmatpush1.msra.mxu0 0.0
    %464 = vmatprep.subr.mxu0 0.0
    %465 = vmatpush1.msra.mxu0 0.0
    %466 = vmatprep.subr.mxu0 0.0
    %467 = vmatpush1.msra.mxu0 0.0
    %468 = vmatprep.subr.mxu0 0.0
    %469 = vmatpush1.msra.mxu0 0.0
    %470 = vmatprep.subr.mxu0 0.0
    %471 = vmatpush1.msra.mxu0 0.0
    %472 = vmatprep.subr.mxu0 0.0
    %473 = vmatpush1.msra.mxu0 0.0
    %474 = vmatprep.subr.mxu0 0.0
    %475 = vmatpush1.msra.mxu0 0.0
    %476 = vmatprep.subr.mxu0 0.0
    %477 = vmatpush1.msra.mxu0 0.0
    %478 = vmatprep.subr.mxu0 0.0
    %479 = vmatpush1.msra.mxu0 0.0
    %480 = vmatprep.subr.mxu0 0.0
    %481 = vmatpush1.msra.mxu0 0.0
    %482 = vmatprep.subr.mxu0 0.0
    %483 = vmatpush1.msra.mxu0 0.0
    %484 = vmatprep.subr.mxu0 0.0
    %485 = vmatpush1.msra.mxu0 0.0
    %486 = vmatprep.subr.mxu0 0.0
    %487 = vmatpush1.msra.mxu0 0.0
    %488 = vmatprep.subr.mxu0 0.0
    %489 = vmatpush1.msra.mxu0 0.0
    %490 = vmatprep.subr.mxu0 0.0
    %491 = vmatpush1.msra.mxu0 0.0
    %492 = vmatprep.subr.mxu0 0.0
    %493 = vmatpush1.msra.mxu0 0.0
    %494 = vmatprep.subr.mxu0 0.0
    %495 = vmatpush1.msra.mxu0 0.0
    %496 = vmatprep.subr.mxu0 0.0
    %497 = vmatpush1.msra.mxu0 0.0
    %498 = vmatprep.subr.mxu0 0.0
    %499 = vmatpush1.msra.mxu0 0.0
    %500 = vmatprep.mubr.f32.mxu0 0.0
    %501 = vmatmul.mubr.f32.gmra.mrb[0].mxu0 %v434
    %v502 = vpop.f32.mrb[0].mxu0
    %v503 = vadd.f32 %v432, %v502
    %v504 = vpop.f32.mrb[0].mxu0
    %505 = vdwg.mxu0
    %v506 = vand.u32 2147483647, %v503
    %v507 = vsub.f32 0.0, %v506
    %v508 = vmul.f32 %v507, 1.442695
    %v509 = vpow.pop %v508
    %vm510 = vcmp.ge.f32.partialorder %v503, 0.0
    %v511 = vsel %vm510, 1.0, %v509
    %v512 = vadd.f32 %v509, 1.0
    %v513 = vrcp.pop %v512
    %v514 = vmul.f32 %v511, %v513
    %v515 = vsub.f32 1.0, %v514
    %v517 = vrot.slane %v514, 7
    %vm519 = vcmask 1040384
    %v520 = vsel %vm519, %v515, %v517
    %521 = vst [vmem:[#allocation3] sm:$0x3] %v520
    // Predicated region
    $region30: #{tpu_custom_call.1} parent=1 // pred_check
      _
    $region31: #{tpu_custom_call.1} parent=1 // pred_check_branch
      %523 = sbr.rel (0) target = $region33
    $region32: #{tpu_custom_call.1} parent=1 // pred_region
      %s525 = ssub.s32 32, 32
      %526 = vsyncadd [#allocation4], %s525
      %s528 = sshll.u32 [#allocation3], 4
      %s529 = int_to_ptr.vmem [resolvable:$true] %s528
      %531 = dma.vmem_to_hbm [thread:$0]  %s529, 32, %s7, [#allocation4]
    $region33: #{tpu_custom_call.1} parent=1 // pred_fallthru
      _
    // Predicated region
    $region34: #{tpu_custom_call.1} parent=1 // pred_check
      _
    $region35: #{tpu_custom_call.1} parent=1 // pred_check_branch
      %533 = sbr.rel (0) target = $region37
    $region36: #{tpu_custom_call.1} parent=1 // pred_region
      %534 = dma.done [#allocation4], 32
    $region37: #{tpu_custom_call.1} parent=1 // pred_fallthru
      _
    %535 = vsyncpa [#allocation4], 1

</llo_original>
